<compile_context>
chip_gen: v5e
topology: v5e:2x2
jax: 0.10.0
libtpu: 0.0.40
codegen_flags: <defaults>
</compile_context>

<pallas_src>
import functools

import jax
import jax.numpy as jnp
from jax.experimental import pallas as pl
from jax.experimental.pallas import tpu as pltpu


def _logistic_classifier_kernel(x_ref, g_ref, sel_ref, bias_ref, out_ref, *,
                                reduce_precision):
    # x_ref:    (TN, D)        tile of node features (f32)
    # g_ref:    (D, C*D + C)   [:, :C*D]: packed sigma, g[d, c*D+e] = sigma[c,d,e]
    #                          [:, C*D:]: -(S_c m_c + S_c^T m_c)  (linear term)
    # sel_ref:  (C*D, C)       0/1 block-sum selector                (resident)
    # bias_ref: (1, C)         bias_c + m_c^T S_c m_c               (resident)
    # out_ref:  (TN, C)
    x = x_ref[...]                                   # f32 (TN, D)
    cd = sel_ref.shape[0]                            # C*D
    n_cent = sel_ref.shape[1]                        # C

    mm_prec = (jax.lax.Precision.HIGHEST
               if g_ref.dtype == jnp.float32 else None)
    # One MXU matmul for all centroids: quadratic "W" block + folded linear
    # term in the trailing C columns.
    w_all = jnp.dot(x.astype(g_ref.dtype), g_ref[...],
                    precision=mm_prec, preferred_element_type=jnp.float32)
    w = w_all[:, :cd]                                # (TN, C*D): (x^T S_c)[e]
    lin = w_all[:, cd:]                              # (TN, C):  -x.(S_c m_c + S_c^T m_c)

    # Lane-tiled copy of x so lane-block c of xt aligns with lane-block c of w.
    xt = jnp.concatenate([x] * n_cent, axis=1)       # (TN, C*D)
    prod = w * xt                                    # (TN, C*D)

    # Block-wise sum over D via an exact 0/1 selector on the MXU.  DEFAULT
    # precision => single pass (only `prod` terms are bf16-truncated before the
    # f32 accumulation); HIGHEST is available via exact_reduce.
    quad = jnp.dot(prod, sel_ref[...],
                   precision=reduce_precision,
                   preferred_element_type=jnp.float32)   # (TN, C)

    out_ref[...] = (quad + lin + bias_ref[...]).astype(out_ref.dtype)


def logistic_classifier_forward(node_feats, means, sigma, bias, *,
                                block_n=2048, use_bf16_matmul=False,
                                exact_reduce=False):
    """node_feats: (N, D); means: (C, D); sigma: (C, D, D); bias: (C,) -> (N, C)."""
    N, D = node_feats.shape
    C = means.shape[0]
    f32 = jnp.float32
    x = node_feats.astype(f32)
    means = means.astype(f32)
    sigma = sigma.astype(f32)
    bias = bias.astype(f32)

    hi = jax.lax.Precision.HIGHEST
    # --- Grid-invariant constants (tiny, computed once in f32 by XLA) -------
    sigma_packed = jnp.transpose(sigma, (1, 0, 2)).reshape(D, C * D)
    sm = jnp.einsum("cde,ce->cd", sigma, means, precision=hi)    # S_c m_c
    smt = jnp.einsum("ced,ce->cd", sigma, means, precision=hi)   # S_c^T m_c
    lincoef = -(sm + smt).T                                      # (D, C)
    quad_const = jnp.einsum("cd,cde,ce->c", means, sigma, means, precision=hi)
    bias_eff = (bias + quad_const).reshape(1, C)                 # (1, C)
    g = jnp.concatenate([sigma_packed, lincoef], axis=1)         # (D, C*D + C)
    selector = jnp.repeat(jnp.eye(C, dtype=f32), D, axis=0)      # (C*D, C)
    if use_bf16_matmul:
        # Only the main-matmul operand is cast (quadratic + folded linear
        # coefficients); accumulation and all VPU math stay in f32.
        g = g.astype(jnp.bfloat16)

    # --- Row-tile sizing -----------------------------------------------------
    def _round_up(a, m):
        return ((a + m - 1) // m) * m

    ROW = 8                                            # sublane granularity
    block_n = int(min(max(block_n, ROW), 4096))        # VMEM cap (v7x: 64 MiB)
    n_aligned = _round_up(N, ROW)
    bn = min(_round_up(block_n, ROW), n_aligned)
    if n_aligned > ROW:
        # Keep >= 2 grid steps when possible so v7x can shard the "parallel"
        # axis across its 2 TensorCores (no-op cost on 1-TC v5e/v6e).
        bn = min(bn, _round_up(-(-n_aligned // 2), ROW))
    bn = max(bn, ROW)
    n_pad = _round_up(N, bn)
    if n_pad != N:
        # Padded rows produce finite garbage (= bias_eff) and are sliced away.
        x = jnp.pad(x, ((0, n_pad - N), (0, 0)))

    reduce_prec = hi if exact_reduce else jax.lax.Precision.DEFAULT
    kernel = functools.partial(_logistic_classifier_kernel,
                               reduce_precision=reduce_prec)

    out = pl.pallas_call(
        kernel,
        out_shape=jax.ShapeDtypeStruct((n_pad, C), f32),
        grid_spec=pltpu.PrefetchScalarGridSpec(
            num_scalar_prefetch=0,
            grid=(n_pad // bn,),
            in_specs=[
                pl.BlockSpec((bn, D), lambda i: (i, 0)),          # x tile
                pl.BlockSpec((D, C * D + C), lambda i: (0, 0)),   # sigma | lin
                pl.BlockSpec((C * D, C), lambda i: (0, 0)),       # 0/1 selector
                pl.BlockSpec((1, C), lambda i: (0, 0)),           # eff. bias
            ],
            out_specs=pl.BlockSpec((bn, C), lambda i: (i, 0)),
        ),
        compiler_params=pltpu.CompilerParams(
            dimension_semantics=("parallel",),
            vmem_limit_bytes=32 * 1024 * 1024,
        ),
    )(x, g, selector, bias_eff)
    return out[:N]


def _reference(x, m, s, b):
    # Pure elementwise-sum reference (no MXU / precision ambiguity).
    v = x[:, None, :] - m[None, :, :]                            # (N, C, D)
    w = jnp.sum(v[:, :, :, None] * s[None, :, :, :], axis=2)     # (N, C, D)
    return jnp.sum(w * v, axis=-1) + b[None, :]                  # (N, C)


if __name__ == "__main__":
    # Small shapes consistent with the module: hidden_dims=32, n_centroids=8.
    hidden_dims = 32
    n_centroids = 8

    key = jax.random.PRNGKey(0)
    k1, k2, k3, k4 = jax.random.split(key, 4)

    # Case 1: parameters exactly as in the module __init__ (ones / identity).
    n_nodes = 16
    node_feats = jax.random.normal(k1, (n_nodes, hidden_dims), jnp.float32)
    means = jnp.ones((n_centroids, hidden_dims), jnp.float32)
    sigma = jnp.broadcast_to(jnp.eye(hidden_dims, dtype=jnp.float32),
                             (n_centroids, hidden_dims, hidden_dims))
    bias = jnp.ones((n_centroids,), jnp.float32)

    ref = _reference(node_feats, means, sigma, bias)
    out = jax.block_until_ready(
        logistic_classifier_forward(node_feats, means, sigma, bias))
    assert out.shape == (n_nodes, n_centroids)
    # Default path: single-pass (bf16-operand) MXU reduction of the quadratic
    # terms -> small absolute slack on O(60)-magnitude outputs.
    assert jnp.allclose(out, ref, atol=5e-2, rtol=2e-3)

    out_exact = jax.block_until_ready(
        logistic_classifier_forward(node_feats, means, sigma, bias,
                                    exact_reduce=True))
    assert jnp.allclose(out_exact, ref, atol=2e-3, rtol=1e-3)

    # Case 2: random (non-identity) sigma/means, N not a tile multiple,
    # exercising the general quadratic form, the padding path and the
    # >=2-grid-step tile guard.
    n2 = 100
    x2 = jax.random.normal(k2, (n2, hidden_dims), jnp.float32)
    m2 = jax.random.normal(k3, (n_centroids, hidden_dims), jnp.float32)
    s2 = jax.random.normal(k4, (n_centroids, hidden_dims, hidden_dims),
                           jnp.float32)
    b2 = jnp.linspace(-1.0, 1.0, n_centroids, dtype=jnp.float32)
    ref2 = _reference(x2, m2, s2, b2)

    out2 = jax.block_until_ready(
        logistic_classifier_forward(x2, m2, s2, b2, block_n=4096))
    assert out2.shape == (n2, n_centroids)
    # Outputs are O(100); tolerance sized for the single bf16-operand
    # truncation pass in the reduction matmul.
    assert jnp.allclose(out2, ref2, atol=2.5e-1, rtol=1e-2)

    out2_exact = jax.block_until_ready(
        logistic_classifier_forward(x2, m2, s2, b2, block_n=4096,
                                    exact_reduce=True))
    assert jnp.allclose(out2_exact, ref2, atol=1e-2, rtol=1e-3)

    print("KERNEL_OK")
</pallas_src>

<mosaic_0001>
module attributes {stable_mosaic.version = 11 : i64} {
  func.func @_logistic_classifier_kernel(%arg0: i32, %arg1: memref<8x32xf32, #tpu.memory_space<vmem>>, %arg2: memref<32x264xf32, #tpu.memory_space<vmem>>, %arg3: memref<256x8xf32, #tpu.memory_space<vmem>>, %arg4: memref<1x8xf32, #tpu.memory_space<vmem>>, %arg5: memref<8x8xf32, #tpu.memory_space<vmem>>) attributes {dimension_semantics = [#tpu.dimension_semantics<parallel>], iteration_bounds = array<i64: 2>, scalar_prefetch = 0 : i64, scratch_operands = 0 : i64, tpu.core_type = #tpu.core_type<tc>, window_params = [{transform_indices = @transform_0, window_bounds = array<i64: 8, 32>}, {pipeline_mode = #tpu.pipeline_mode<synchronous>, transform_indices = @transform_1, window_bounds = array<i64: 32, 264>}, {pipeline_mode = #tpu.pipeline_mode<synchronous>, transform_indices = @transform_2, window_bounds = array<i64: 256, 8>}, {pipeline_mode = #tpu.pipeline_mode<synchronous>, transform_indices = @transform_3, window_bounds = array<i64: 1, 8>}, {transform_indices = @transform_4, window_bounds = array<i64: 8, 8>}]} {
    %c0 = arith.constant 0 : index
    %c0_0 = arith.constant 0 : index
    %0 = vector.load %arg1[%c0, %c0_0] : memref<8x32xf32, #tpu.memory_space<vmem>>, vector<8x32xf32>
    %c0_1 = arith.constant 0 : index
    %c0_2 = arith.constant 0 : index
    %1 = vector.load %arg2[%c0_1, %c0_2] : memref<32x264xf32, #tpu.memory_space<vmem>>, vector<32x264xf32>
    %cst = arith.constant dense<0.000000e+00> : vector<8x264xf32>
    %2 = tpu.matmul %0, %1, %cst {dimension_numbers = #tpu.dot_dimension_numbers<[1], [0], [0], [1], [0, 0, 1, 1], [], []>, precision = #tpu.contract_precision<fp32>} : vector<8x32xf32>, vector<32x264xf32>, vector<8x264xf32> -> vector<8x264xf32>
    %3 = vector.extract_strided_slice %2 {offsets = [0, 0], sizes = [8, 256], strides = [1, 1]} : vector<8x264xf32> to vector<8x256xf32>
    %4 = vector.extract_strided_slice %2 {offsets = [0, 256], sizes = [8, 8], strides = [1, 1]} : vector<8x264xf32> to vector<8x8xf32>
    %5 = tpu.concatenate %0, %0, %0, %0, %0, %0, %0, %0 in 1 : vector<8x32xf32>, vector<8x32xf32>, vector<8x32xf32>, vector<8x32xf32>, vector<8x32xf32>, vector<8x32xf32>, vector<8x32xf32>, vector<8x32xf32> -> vector<8x256xf32>
    %6 = arith.mulf %3, %5 : vector<8x256xf32>
    %c0_3 = arith.constant 0 : index
    %c0_4 = arith.constant 0 : index
    %7 = vector.load %arg3[%c0_3, %c0_4] : memref<256x8xf32, #tpu.memory_space<vmem>>, vector<256x8xf32>
    %cst_5 = arith.constant dense<0.000000e+00> : vector<8x8xf32>
    %8 = tpu.matmul %6, %7, %cst_5 {dimension_numbers = #tpu.dot_dimension_numbers<[1], [0], [0], [1], [0, 0, 1, 1], [], []>} : vector<8x256xf32>, vector<256x8xf32>, vector<8x8xf32> -> vector<8x8xf32>
    %9 = arith.addf %8, %4 : vector<8x8xf32>
    %c0_6 = arith.constant 0 : index
    %c0_7 = arith.constant 0 : index
    %10 = vector.load %arg4[%c0_6, %c0_7] : memref<1x8xf32, #tpu.memory_space<vmem>>, vector<1x8xf32>
    %11 = vector.broadcast %10 : vector<1x8xf32> to vector<8x8xf32>
    %12 = arith.addf %9, %11 : vector<8x8xf32>
    %c0_8 = arith.constant 0 : index
    %c0_9 = arith.constant 0 : index
    %13 = vector.load %arg5[%c0_8, %c0_9] : memref<8x8xf32, #tpu.memory_space<vmem>>, vector<8x8xf32>
    tpu.vector_store %arg5[%c0_8, %c0_9], %12 {strides = array<i32>} : memref<8x8xf32, #tpu.memory_space<vmem>>, vector<8x8xf32>,
    return
  }
  func.func @transform_0(%arg0: i32) -> (i32, i32) {
    %c0_i32 = arith.constant 0 : i32
    %c0_i32_0 = arith.constant 0 : i32
    return %arg0, %c0_i32 : i32, i32
  }
  func.func @transform_1(%arg0: i32) -> (i32, i32) {
    %c0_i32 = arith.constant 0 : i32
    %c0_i32_0 = arith.constant 0 : i32
    %c0_i32_1 = arith.constant 0 : i32
    return %c0_i32, %c0_i32_0 : i32, i32
  }
  func.func @transform_2(%arg0: i32) -> (i32, i32) {
    %c0_i32 = arith.constant 0 : i32
    %c0_i32_0 = arith.constant 0 : i32
    %c0_i32_1 = arith.constant 0 : i32
    return %c0_i32, %c0_i32_0 : i32, i32
  }
  func.func @transform_3(%arg0: i32) -> (i32, i32) {
    %c0_i32 = arith.constant 0 : i32
    %c0_i32_0 = arith.constant 0 : i32
    %c0_i32_1 = arith.constant 0 : i32
    return %c0_i32, %c0_i32_0 : i32, i32
  }
  func.func @transform_4(%arg0: i32) -> (i32, i32) {
    %c0_i32 = arith.constant 0 : i32
    %c0_i32_0 = arith.constant 0 : i32
    return %arg0, %c0_i32 : i32, i32
  }
}

</mosaic_0001>

<llo_original>
// kernel: tpu_custom_call.1
$region0: #{tpu_custom_call.1}
  #allocation0 [shape = 'u32[]', space=smem, size = 0x4, offset = 0x4, fixed_abs, tag = 'smem constant byte address 0x4 - core index']
  #allocation1 [shape = 'u32[72,128]{1,0:T(1,128)}', space=vmem, size = 0x9000, scoped, tag = 'internal scratch']
  %s0 = inlined_call_operand.vmem [shape: f32[16,32], index: 0, kind: input, shape index: {}]
  %s1 = inlined_call_operand.vmem [shape: f32[32,264], index: 1, kind: input, shape index: {}]
  %s2 = inlined_call_operand.vmem [shape: f32[256,8], index: 2, kind: input, shape index: {}]
  %s3 = inlined_call_operand.vmem [shape: f32[1,8], index: 3, kind: input, shape index: {}]
  %s4 = inlined_call_operand.vmem [shape: f32[16,8], index: 4, kind: output, shape index: {}]
  %s5 = sld [smem:[#allocation0]]
  $region49: #{tpu_custom_call.1} parent=0
    _
  %s7 = ssub.s32 1, %s5
  %s8 = scalar_select 0, %s7, %s5
  loop: start=0, step=1, limit=4
  $region2: #{tpu_custom_call.1} parent=0 // loop_pre_header
    _
  $region3: #{tpu_custom_call.1} parent=0 // loop_header
    %s10 = sphi 0, %s14
    %p11 = scmp.ge.s32.totalorder %s10, 4
    %s20 = sphi 0, %s22
    %s23 = sphi 0, %s20
    %s24 = sphi 0, %s23
    %s40 = sphi 0, %s24
    %s44 = sphi 0, %s44
    %s46 = sphi 0, %s44
    %s47 = sphi 0, %s46
    %s61 = sphi 0, %s47
    %s65 = sphi 0, %s65
    %s67 = sphi 0, %s65
    %s68 = sphi 0, %s67
    %s82 = sphi 0, %s68
    %s86 = sphi 0, %s86
    %s88 = sphi 0, %s86
    %s89 = sphi 0, %s88
    %s103 = sphi 0, %s89
    %s109 = sphi 0, %s111
    %s112 = sphi 0, %s109
    %s113 = sphi 0, %s112
    %s129 = sphi 0, %s113
  $region4: #{tpu_custom_call.1} parent=0 // loop_header_branch
    %13 = sbr.rel (%p11) target = $region8
  $region5: #{tpu_custom_call.1} parent=0 // loop_body
    %s15 = ssub.s32 %s10, 1
    %s16 = ssub.s32 %s10, 2
    %s17 = sadd.s32 %s10, 1
    %s18 = ssub.s32 %s10, %s17
    %p19 = scmp.eq.s32.totalorder %s18, 0
    %s21 = sadd.s32 %s20, 1
    %s22 = scalar_select %p19, %s20, %s21
    %p25 = pneg %p19
    %p26 = scmp.eq.s32.totalorder %s10, 1
    %p27 = por %p25, %p26
    %p28 = scmp.ne.s32.totalorder %s20, %s23
    %p29 = scmp.eq.s32.totalorder %s10, 0
    %p30 = por %p28, %p29
    %p31 = scmp.ne.s32.totalorder %s20, %s23
    %p32 = scmp.eq.s32.totalorder %s15, 1
    %p33 = por %p31, %p32
    %p34 = scmp.ne.s32.totalorder %s23, %s24
    %p35 = scmp.eq.s32.totalorder %s15, 0
    %p36 = por %p34, %p35
    %p37 = scmp.ne.s32.totalorder %s23, %s24
    %p38 = scmp.eq.s32.totalorder %s16, 1
    %p39 = por %p37, %p38
    %p41 = scmp.ne.s32.totalorder %s24, %s40
    %p42 = scmp.eq.s32.totalorder %s16, 0
    %p43 = por %p41, %p42
    %s45 = sadd.s32 %s44, 1
    %p48 = scmp.eq.s32.totalorder %s10, 1
    %p49 = scmp.ne.s32.totalorder %s44, %s46
    %p50 = scmp.eq.s32.totalorder %s10, 0
    %p51 = por %p49, %p50
    %p52 = scmp.ne.s32.totalorder %s44, %s46
    %p53 = scmp.eq.s32.totalorder %s15, 1
    %p54 = por %p52, %p53
    %p55 = scmp.ne.s32.totalorder %s46, %s47
    %p56 = scmp.eq.s32.totalorder %s15, 0
    %p57 = por %p55, %p56
    %p58 = scmp.ne.s32.totalorder %s46, %s47
    %p59 = scmp.eq.s32.totalorder %s16, 1
    %p60 = por %p58, %p59
    %p62 = scmp.ne.s32.totalorder %s47, %s61
    %p63 = scmp.eq.s32.totalorder %s16, 0
    %p64 = por %p62, %p63
    %s66 = sadd.s32 %s65, 1
    %p69 = scmp.eq.s32.totalorder %s10, 1
    %p70 = scmp.ne.s32.totalorder %s65, %s67
    %p71 = scmp.eq.s32.totalorder %s10, 0
    %p72 = por %p70, %p71
    %p73 = scmp.ne.s32.totalorder %s65, %s67
    %p74 = scmp.eq.s32.totalorder %s15, 1
    %p75 = por %p73, %p74
    %p76 = scmp.ne.s32.totalorder %s67, %s68
    %p77 = scmp.eq.s32.totalorder %s15, 0
    %p78 = por %p76, %p77
    %p79 = scmp.ne.s32.totalorder %s67, %s68
    %p80 = scmp.eq.s32.totalorder %s16, 1
    %p81 = por %p79, %p80
    %p83 = scmp.ne.s32.totalorder %s68, %s82
    %p84 = scmp.eq.s32.totalorder %s16, 0
    %p85 = por %p83, %p84
    %s87 = sadd.s32 %s86, 1
    %p90 = scmp.eq.s32.totalorder %s10, 1
    %p91 = scmp.ne.s32.totalorder %s86, %s88
    %p92 = scmp.eq.s32.totalorder %s10, 0
    %p93 = por %p91, %p92
    %p94 = scmp.ne.s32.totalorder %s86, %s88
    %p95 = scmp.eq.s32.totalorder %s15, 1
    %p96 = por %p94, %p95
    %p97 = scmp.ne.s32.totalorder %s88, %s89
    %p98 = scmp.eq.s32.totalorder %s15, 0
    %p99 = por %p97, %p98
    %p100 = scmp.ne.s32.totalorder %s88, %s89
    %p101 = scmp.eq.s32.totalorder %s16, 1
    %p102 = por %p100, %p101
    %p104 = scmp.ne.s32.totalorder %s89, %s103
    %p105 = scmp.eq.s32.totalorder %s16, 0
    %p106 = por %p104, %p105
    %s107 = ssub.s32 %s10, %s17
    %p108 = scmp.eq.s32.totalorder %s107, 0
    %s110 = sadd.s32 %s109, 1
    %s111 = scalar_select %p108, %s109, %s110
    %p114 = pneg %p108
    %p115 = scmp.eq.s32.totalorder %s10, 1
    %p116 = por %p114, %p115
    %p117 = scmp.ne.s32.totalorder %s109, %s112
    %p118 = scmp.eq.s32.totalorder %s10, 0
    %p119 = por %p117, %p118
    %p120 = scmp.ne.s32.totalorder %s109, %s112
    %p121 = scmp.eq.s32.totalorder %s15, 1
    %p122 = por %p120, %p121
    %p123 = scmp.ne.s32.totalorder %s112, %s113
    %p124 = scmp.eq.s32.totalorder %s15, 0
    %p125 = por %p123, %p124
    %p126 = scmp.ne.s32.totalorder %s112, %s113
    %p127 = scmp.eq.s32.totalorder %s16, 1
    %p128 = por %p126, %p127
    %p130 = scmp.ne.s32.totalorder %s113, %s129
    %p131 = scmp.eq.s32.totalorder %s16, 0
    %p132 = por %p130, %p131
    %p133 = scmp.le.s32.totalorder 1, %s10
    %p134 = scmp.lt.s32.totalorder %s10, 3
    %p135 = pnand %p133, %p134
    %p136 = pneg %p135
    // Predicated region
    $region9: #{tpu_custom_call.1} parent=5 // pred_check
      _
    $region10: #{tpu_custom_call.1} parent=5 // pred_check_branch
      %138 = sbr.rel (%p135) target = $region12
    $region11: #{tpu_custom_call.1} parent=5 // pred_region
      %s139 = ssub.s32 %s10, 1
      // Predicated region
      $region13: #{tpu_custom_call.1} parent=11 // pred_check
        %p140 = pneg %p57
      $region14: #{tpu_custom_call.1} parent=11 // pred_check_branch
        %142 = sbr.rel (%p140) target = $region16
      $region15: #{tpu_custom_call.1} parent=11 // pred_region
        _
      $region16: #{tpu_custom_call.1} parent=11 // pred_fallthru
        _
      // Predicated region
      $region17: #{tpu_custom_call.1} parent=11 // pred_check
        %p143 = pneg %p78
      $region18: #{tpu_custom_call.1} parent=11 // pred_check_branch
        %145 = sbr.rel (%p143) target = $region20
      $region19: #{tpu_custom_call.1} parent=11 // pred_region
        _
      $region20: #{tpu_custom_call.1} parent=11 // pred_fallthru
        _
      // Predicated region
      $region21: #{tpu_custom_call.1} parent=11 // pred_check
        %p146 = pneg %p99
      $region22: #{tpu_custom_call.1} parent=11 // pred_check_branch
        %148 = sbr.rel (%p146) target = $region24
      $region23: #{tpu_custom_call.1} parent=11 // pred_region
        _
      $region24: #{tpu_custom_call.1} parent=11 // pred_fallthru
        _
    $region12: #{tpu_custom_call.1} parent=5 // pred_fallthru
      _
    %p149 = scmp.lt.s32.totalorder %s10, 2
    // Predicated region
    $region25: #{tpu_custom_call.1} parent=5 // pred_check
      %p150 = pneg %p149
    $region26: #{tpu_custom_call.1} parent=5 // pred_check_branch
      %152 = sbr.rel (%p150) target = $region28
    $region27: #{tpu_custom_call.1} parent=5 // pred_region
      // Predicated region
      $region29: #{tpu_custom_call.1} parent=27 // pred_check
        %p153 = pneg %p30
      $region30: #{tpu_custom_call.1} parent=27 // pred_check_branch
        %155 = sbr.rel (%p153) target = $region32
      $region31: #{tpu_custom_call.1} parent=27 // pred_region
        %p156 = scmp.lt.s32.totalorder %s10, 1
        %s157 = scalar_select %p156, %s10, 1
        %s158 = smul.addr %s157, 8
        %s159 = scalar_lea.vmem %s0, %s158
      $region32: #{tpu_custom_call.1} parent=27 // pred_fallthru
        _
    $region28: #{tpu_custom_call.1} parent=5 // pred_fallthru
      _
    %p160 = scmp.le.s32.totalorder 1, %s10
    %p161 = scmp.lt.s32.totalorder %s10, 3
    %p162 = pnand %p160, %p161
    %p163 = pneg %p162
    // Predicated region
    $region33: #{tpu_custom_call.1} parent=5 // pred_check
      _
    $region34: #{tpu_custom_call.1} parent=5 // pred_check_branch
      %165 = sbr.rel (%p162) target = $region36
    $region35: #{tpu_custom_call.1} parent=5 // pred_region
      %s166 = ssub.s32 %s10, 1
      %p167 = scmp.lt.s32.totalorder %s15, 1
      %s168 = scalar_select %p167, %s15, 1
      %s169 = smul.addr %s168, 8
      %s170 = scalar_lea.vmem %s0, %s169
      %p171 = pneg %p36
      %p172 = pneg %p33
      %p173 = pneg %p57
      %p174 = pneg %p54
      %p175 = pneg %p78
      %p176 = pneg %p75
      %p177 = pneg %p99
      %p178 = pneg %p96
      %p179 = pneg %p125
      %p180 = pneg %p122
      %p181 = scmp.lt.s32.totalorder %s15, 1
      %s182 = scalar_select %p181, %s15, 1
      %s183 = smul.addr %s182, 8
      %s184 = scalar_lea.vmem %s4, %s183
      %p185 = scmp.lt.s32.totalorder %s15, 1
      %s186 = scalar_select %p185, %s15, 1
      %s187 = smul.addr %s186, 8
      %s188 = scalar_lea.vmem %s0, %s187
      %p189 = scmp.lt.s32.totalorder %s15, 1
      %s190 = scalar_select %p189, %s15, 1
      %s191 = smul.addr %s190, 8
      %s192 = scalar_lea.vmem %s4, %s191
      %v193 = vld [vmem:[%s188] sm:$0xff]
      %v194 = vld [vmem:[%s1] sm:$0xff]
      %v195 = vld [vmem:[%s1 + $0x8] sm:$0xff]
      %v196 = vld [vmem:[%s1 + $0x10] sm:$0xff]
      %v197 = vld [vmem:[%s1 + $0x18] sm:$0xff]
      %v198 = vld [vmem:[%s1 + $0x20] sm:$0xff]
      %v199 = vld [vmem:[%s1 + $0x28] sm:$0xff]
      %v200 = vld [vmem:[%s1 + $0x30] sm:$0xff]
      %v201 = vld [vmem:[%s1 + $0x38] sm:$0xff]
      %v202 = vld [vmem:[%s1 + $0x40] sm:$0xff]
      %v203 = vld [vmem:[%s1 + $0x48] sm:$0xff]
      %v204 = vld [vmem:[%s1 + $0x50] sm:$0xff]
      %v205 = vld [vmem:[%s1 + $0x58] sm:$0xff]
      %vm206 = vcmask 261120
      %v208 = vsel %vm206, %v193, 0
      %210 = vmatpush.msra.mxu0 0.0
      %211 = vmatpush.msra.mxu0 0.0
      %212 = vmatpush.msra.mxu0 0.0
      %213 = vmatpush.msra.mxu0 0.0
      %214 = vmatpush.msra.mxu0 0.0
      %215 = vmatpush.msra.mxu0 0.0
      %216 = vmatpush.msra.mxu0 0.0
      %217 = vmatpush.msra.mxu0 0.0
      %218 = vmatpush.msra.mxu0 0.0
      %219 = vmatpush.msra.mxu0 0.0
      %220 = vmatpush.msra.mxu0 0.0
      %221 = vmatpush.msra.mxu0 0.0
      %v222 = vand.u32 %v203, 4294901760
      %223 = vmatpush.msra.mxu0 %v222
      %v224 = vand.u32 %v200, 4294901760
      %225 = vmatpush.msra.mxu0 %v224
      %v226 = vand.u32 %v197, 4294901760
      %227 = vmatpush.msra.mxu0 %v226
      %v228 = vand.u32 %v194, 4294901760
      %229 = vmatpush.msra.mxu0 %v228
      %v230 = vand.u32 %v208, 4294901760
      %v231 = vsub.f32 %v208, %v230
      %v232 = vand.u32 %v231, 4294901760
      %v233 = vsub.f32 %v231, %v232
      %v234 = vand.u32 %v233, 4294901760
      %235 = vmatmul.f32.gmra.mxu0 %v234
      %v236 = vpop.f32.mrf.mxu0
      %v237 = vadd.f32 0.0, %v236
      %238 = vdwg.mxu0
      %239 = vmatpush.msra.mxu0 0.0
      %240 = vmatpush.msra.mxu0 0.0
      %241 = vmatpush.msra.mxu0 0.0
      %242 = vmatpush.msra.mxu0 0.0
      %243 = vmatpush.msra.mxu0 0.0
      %244 = vmatpush.msra.mxu0 0.0
      %245 = vmatpush.msra.mxu0 0.0
      %246 = vmatpush.msra.mxu0 0.0
      %247 = vmatpush.msra.mxu0 0.0
      %248 = vmatpush.msra.mxu0 0.0
      %249 = vmatpush.msra.mxu0 0.0
      %250 = vmatpush.msra.mxu0 0.0
      %v251 = vand.u32 %v203, 4294901760
      %v252 = vsub.f32 %v203, %v251
      %v253 = vand.u32 %v252, 4294901760
      %v254 = vsub.f32 %v252, %v253
      %v255 = vand.u32 %v254, 4294901760
      %256 = vmatpush.msra.mxu0 %v255
      %v257 = vand.u32 %v200, 4294901760
      %v258 = vsub.f32 %v200, %v257
      %v259 = vand.u32 %v258, 4294901760
      %v260 = vsub.f32 %v258, %v259
      %v261 = vand.u32 %v260, 4294901760
      %262 = vmatpush.msra.mxu0 %v261
      %v263 = vand.u32 %v197, 4294901760
      %v264 = vsub.f32 %v197, %v263
      %v265 = vand.u32 %v264, 4294901760
      %v266 = vsub.f32 %v264, %v265
      %v267 = vand.u32 %v266, 4294901760
      %268 = vmatpush.msra.mxu0 %v267
      %v269 = vand.u32 %v194, 4294901760
      %v270 = vsub.f32 %v194, %v269
      %v271 = vand.u32 %v270, 4294901760
      %v272 = vsub.f32 %v270, %v271
      %v273 = vand.u32 %v272, 4294901760
      %274 = vmatpush.msra.mxu0 %v273
      %v275 = vand.u32 %v208, 4294901760
      %276 = vmatmul.f32.gmra.mxu0 %v275
      %v277 = vpop.f32.mrf.mxu0
      %v278 = vadd.f32 %v237, %v277
      %279 = vdwg.mxu0
      %280 = vmatpush.msra.mxu0 0.0
      %281 = vmatpush.msra.mxu0 0.0
      %282 = vmatpush.msra.mxu0 0.0
      %283 = vmatpush.msra.mxu0 0.0
      %284 = vmatpush.msra.mxu0 0.0
      %285 = vmatpush.msra.mxu0 0.0
      %286 = vmatpush.msra.mxu0 0.0
      %287 = vmatpush.msra.mxu0 0.0
      %288 = vmatpush.msra.mxu0 0.0
      %289 = vmatpush.msra.mxu0 0.0
      %290 = vmatpush.msra.mxu0 0.0
      %291 = vmatpush.msra.mxu0 0.0
      %v292 = vand.u32 %v203, 4294901760
      %v293 = vsub.f32 %v203, %v292
      %294 = vmatpush.msra.mxu0 %v293
      %v295 = vand.u32 %v200, 4294901760
      %v296 = vsub.f32 %v200, %v295
      %297 = vmatpush.msra.mxu0 %v296
      %v298 = vand.u32 %v197, 4294901760
      %v299 = vsub.f32 %v197, %v298
      %300 = vmatpush.msra.mxu0 %v299
      %v301 = vand.u32 %v194, 4294901760
      %v302 = vsub.f32 %v194, %v301
      %303 = vmatpush.msra.mxu0 %v302
      %v304 = vand.u32 %v208, 4294901760
      %v305 = vsub.f32 %v208, %v304
      %306 = vmatmul.f32.gmra.mxu0 %v305
      %v307 = vpop.f32.mrf.mxu0
      %v308 = vadd.f32 %v278, %v307
      %309 = vdwg.mxu0
      %310 = vmatpush.msra.mxu0 0.0
      %311 = vmatpush.msra.mxu0 0.0
      %312 = vmatpush.msra.mxu0 0.0
      %313 = vmatpush.msra.mxu0 0.0
      %314 = vmatpush.msra.mxu0 0.0
      %315 = vmatpush.msra.mxu0 0.0
      %316 = vmatpush.msra.mxu0 0.0
      %317 = vmatpush.msra.mxu0 0.0
      %318 = vmatpush.msra.mxu0 0.0
      %319 = vmatpush.msra.mxu0 0.0
      %320 = vmatpush.msra.mxu0 0.0
      %321 = vmatpush.msra.mxu0 0.0
      %v322 = vand.u32 %v203, 4294901760
      %323 = vmatpush.msra.mxu0 %v322
      %v324 = vand.u32 %v200, 4294901760
      %325 = vmatpush.msra.mxu0 %v324
      %v326 = vand.u32 %v197, 4294901760
      %327 = vmatpush.msra.mxu0 %v326
      %v328 = vand.u32 %v194, 4294901760
      %329 = vmatpush.msra.mxu0 %v328
      %v330 = vand.u32 %v208, 4294901760
      %v331 = vsub.f32 %v208, %v330
      %v332 = vand.u32 %v331, 4294901760
      %333 = vmatmul.f32.gmra.mxu0 %v332
      %v334 = vpop.f32.mrf.mxu0
      %v335 = vadd.f32 %v308, %v334
      %336 = vdwg.mxu0
      %337 = vmatpush.msra.mxu0 0.0
      %338 = vmatpush.msra.mxu0 0.0
      %339 = vmatpush.msra.mxu0 0.0
      %340 = vmatpush.msra.mxu0 0.0
      %341 = vmatpush.msra.mxu0 0.0
      %342 = vmatpush.msra.mxu0 0.0
      %343 = vmatpush.msra.mxu0 0.0
      %344 = vmatpush.msra.mxu0 0.0
      %345 = vmatpush.msra.mxu0 0.0
      %346 = vmatpush.msra.mxu0 0.0
      %347 = vmatpush.msra.mxu0 0.0
      %348 = vmatpush.msra.mxu0 0.0
      %v349 = vand.u32 %v203, 4294901760
      %v350 = vsub.f32 %v203, %v349
      %v351 = vand.u32 %v350, 4294901760
      %352 = vmatpush.msra.mxu0 %v351
      %v353 = vand.u32 %v200, 4294901760
      %v354 = vsub.f32 %v200, %v353
      %v355 = vand.u32 %v354, 4294901760
      %356 = vmatpush.msra.mxu0 %v355
      %v357 = vand.u32 %v197, 4294901760
      %v358 = vsub.f32 %v197, %v357
      %v359 = vand.u32 %v358, 4294901760
      %360 = vmatpush.msra.mxu0 %v359
      %v361 = vand.u32 %v194, 4294901760
      %v362 = vsub.f32 %v194, %v361
      %v363 = vand.u32 %v362, 4294901760
      %364 = vmatpush.msra.mxu0 %v363
      %v365 = vand.u32 %v208, 4294901760
      %366 = vmatmul.f32.gmra.mxu0 %v365
      %v367 = vpop.f32.mrf.mxu0
      %v368 = vadd.f32 %v335, %v367
      %369 = vdwg.mxu0
      %370 = vmatpush.msra.mxu0 0.0
      %371 = vmatpush.msra.mxu0 0.0
      %372 = vmatpush.msra.mxu0 0.0
      %373 = vmatpush.msra.mxu0 0.0
      %374 = vmatpush.msra.mxu0 0.0
      %375 = vmatpush.msra.mxu0 0.0
      %376 = vmatpush.msra.mxu0 0.0
      %377 = vmatpush.msra.mxu0 0.0
      %378 = vmatpush.msra.mxu0 0.0
      %379 = vmatpush.msra.mxu0 0.0
      %380 = vmatpush.msra.mxu0 0.0
      %381 = vmatpush.msra.mxu0 0.0
      %v382 = vand.u32 %v203, 4294901760
      %383 = vmatpush.msra.mxu0 %v382
      %v384 = vand.u32 %v200, 4294901760
      %385 = vmatpush.msra.mxu0 %v384
      %v386 = vand.u32 %v197, 4294901760
      %387 = vmatpush.msra.mxu0 %v386
      %v388 = vand.u32 %v194, 4294901760
      %389 = vmatpush.msra.mxu0 %v388
      %v390 = vand.u32 %v208, 4294901760
      %391 = vmatmul.f32.gmra.mxu0 %v390
      %v392 = vpop.f32.mrf.mxu0
      %v393 = vadd.f32 %v368, %v392
      %394 = vdwg.mxu0
      %395 = vmatpush.msra.mxu0 0.0
      %396 = vmatpush.msra.mxu0 0.0
      %397 = vmatpush.msra.mxu0 0.0
      %398 = vmatpush.msra.mxu0 0.0
      %399 = vmatpush.msra.mxu0 0.0
      %400 = vmatpush.msra.mxu0 0.0
      %401 = vmatpush.msra.mxu0 0.0
      %402 = vmatpush.msra.mxu0 0.0
      %403 = vmatpush.msra.mxu0 0.0
      %404 = vmatpush.msra.mxu0 0.0
      %405 = vmatpush.msra.mxu0 0.0
      %406 = vmatpush.msra.mxu0 0.0
      %v407 = vand.u32 %v204, 4294901760
      %408 = vmatpush.msra.mxu0 %v407
      %v409 = vand.u32 %v201, 4294901760
      %410 = vmatpush.msra.mxu0 %v409
      %v411 = vand.u32 %v198, 4294901760
      %412 = vmatpush.msra.mxu0 %v411
      %v413 = vand.u32 %v195, 4294901760
      %414 = vmatpush.msra.mxu0 %v413
      %v415 = vand.u32 %v208, 4294901760
      %v416 = vsub.f32 %v208, %v415
      %v417 = vand.u32 %v416, 4294901760
      %v418 = vsub.f32 %v416, %v417
      %v419 = vand.u32 %v418, 4294901760
      %420 = vmatmul.f32.gmra.mxu0 %v419
      %v421 = vpop.f32.mrf.mxu0
      %v422 = vadd.f32 0.0, %v421
      %423 = vdwg.mxu0
      %424 = vmatpush.msra.mxu0 0.0
      %425 = vmatpush.msra.mxu0 0.0
      %426 = vmatpush.msra.mxu0 0.0
      %427 = vmatpush.msra.mxu0 0.0
      %428 = vmatpush.msra.mxu0 0.0
      %429 = vmatpush.msra.mxu0 0.0
      %430 = vmatpush.msra.mxu0 0.0
      %431 = vmatpush.msra.mxu0 0.0
      %432 = vmatpush.msra.mxu0 0.0
      %433 = vmatpush.msra.mxu0 0.0
      %434 = vmatpush.msra.mxu0 0.0
      %435 = vmatpush.msra.mxu0 0.0
      %v436 = vand.u32 %v204, 4294901760
      %v437 = vsub.f32 %v204, %v436
      %v438 = vand.u32 %v437, 4294901760
      %v439 = vsub.f32 %v437, %v438
      %v440 = vand.u32 %v439, 4294901760
      %441 = vmatpush.msra.mxu0 %v440
      %v442 = vand.u32 %v201, 4294901760
      %v443 = vsub.f32 %v201, %v442
      %v444 = vand.u32 %v443, 4294901760
      %v445 = vsub.f32 %v443, %v444
      %v446 = vand.u32 %v445, 4294901760
      %447 = vmatpush.msra.mxu0 %v446
      %v448 = vand.u32 %v198, 4294901760
      %v449 = vsub.f32 %v198, %v448
      %v450 = vand.u32 %v449, 4294901760
      %v451 = vsub.f32 %v449, %v450
      %v452 = vand.u32 %v451, 4294901760
      %453 = vmatpush.msra.mxu0 %v452
      %v454 = vand.u32 %v195, 4294901760
      %v455 = vsub.f32 %v195, %v454
      %v456 = vand.u32 %v455, 4294901760
      %v457 = vsub.f32 %v455, %v456
      %v458 = vand.u32 %v457, 4294901760
      %459 = vmatpush.msra.mxu0 %v458
      %v460 = vand.u32 %v208, 4294901760
      %461 = vmatmul.f32.gmra.mxu0 %v460
      %v462 = vpop.f32.mrf.mxu0
      %v463 = vadd.f32 %v422, %v462
      %464 = vdwg.mxu0
      %465 = vmatpush.msra.mxu0 0.0
      %466 = vmatpush.msra.mxu0 0.0
      %467 = vmatpush.msra.mxu0 0.0
      %468 = vmatpush.msra.mxu0 0.0
      %469 = vmatpush.msra.mxu0 0.0
      %470 = vmatpush.msra.mxu0 0.0
      %471 = vmatpush.msra.mxu0 0.0
      %472 = vmatpush.msra.mxu0 0.0
      %473 = vmatpush.msra.mxu0 0.0
      %474 = vmatpush.msra.mxu0 0.0
      %475 = vmatpush.msra.mxu0 0.0
      %476 = vmatpush.msra.mxu0 0.0
      %v477 = vand.u32 %v204, 4294901760
      %v478 = vsub.f32 %v204, %v477
      %479 = vmatpush.msra.mxu0 %v478
      %v480 = vand.u32 %v201, 4294901760
      %v481 = vsub.f32 %v201, %v480
      %482 = vmatpush.msra.mxu0 %v481
      %v483 = vand.u32 %v198, 4294901760
      %v484 = vsub.f32 %v198, %v483
      %485 = vmatpush.msra.mxu0 %v484
      %v486 = vand.u32 %v195, 4294901760
      %v487 = vsub.f32 %v195, %v486
      %488 = vmatpush.msra.mxu0 %v487
      %v489 = vand.u32 %v208, 4294901760
      %v490 = vsub.f32 %v208, %v489
      %491 = vmatmul.f32.gmra.mxu0 %v490
      %v492 = vpop.f32.mrf.mxu0
      %v493 = vadd.f32 %v463, %v492
      %494 = vdwg.mxu0
      %495 = vmatpush.msra.mxu0 0.0
      %496 = vmatpush.msra.mxu0 0.0
      %497 = vmatpush.msra.mxu0 0.0
      %498 = vmatpush.msra.mxu0 0.0
      %499 = vmatpush.msra.mxu0 0.0
      %500 = vmatpush.msra.mxu0 0.0
      %501 = vmatpush.msra.mxu0 0.0
      %502 = vmatpush.msra.mxu0 0.0
      %503 = vmatpush.msra.mxu0 0.0
      %504 = vmatpush.msra.mxu0 0.0
      %505 = vmatpush.msra.mxu0 0.0
      %506 = vmatpush.msra.mxu0 0.0
      %v507 = vand.u32 %v204, 4294901760
      %508 = vmatpush.msra.mxu0 %v507
      %v509 = vand.u32 %v201, 4294901760
      %510 = vmatpush.msra.mxu0 %v509
      %v511 = vand.u32 %v198, 4294901760
      %512 = vmatpush.msra.mxu0 %v511
      %v513 = vand.u32 %v195, 4294901760
      %514 = vmatpush.msra.mxu0 %v513
      %v515 = vand.u32 %v208, 4294901760
      %v516 = vsub.f32 %v208, %v515
      %v517 = vand.u32 %v516, 4294901760
      %518 = vmatmul.f32.gmra.mxu0 %v517
      %v519 = vpop.f32.mrf.mxu0
      %v520 = vadd.f32 %v493, %v519
      %521 = vdwg.mxu0
      %522 = vmatpush.msra.mxu0 0.0
      %523 = vmatpush.msra.mxu0 0.0
      %524 = vmatpush.msra.mxu0 0.0
      %525 = vmatpush.msra.mxu0 0.0
      %526 = vmatpush.msra.mxu0 0.0
      %527 = vmatpush.msra.mxu0 0.0
      %528 = vmatpush.msra.mxu0 0.0
      %529 = vmatpush.msra.mxu0 0.0
      %530 = vmatpush.msra.mxu0 0.0
      %531 = vmatpush.msra.mxu0 0.0
      %532 = vmatpush.msra.mxu0 0.0
      %533 = vmatpush.msra.mxu0 0.0
      %v534 = vand.u32 %v204, 4294901760
      %v535 = vsub.f32 %v204, %v534
      %v536 = vand.u32 %v535, 4294901760
      %537 = vmatpush.msra.mxu0 %v536
      %v538 = vand.u32 %v201, 4294901760
      %v539 = vsub.f32 %v201, %v538
      %v540 = vand.u32 %v539, 4294901760
      %541 = vmatpush.msra.mxu0 %v540
      %v542 = vand.u32 %v198, 4294901760
      %v543 = vsub.f32 %v198, %v542
      %v544 = vand.u32 %v543, 4294901760
      %545 = vmatpush.msra.mxu0 %v544
      %v546 = vand.u32 %v195, 4294901760
      %v547 = vsub.f32 %v195, %v546
      %v548 = vand.u32 %v547, 4294901760
      %549 = vmatpush.msra.mxu0 %v548
      %v550 = vand.u32 %v208, 4294901760
      %551 = vmatmul.f32.gmra.mxu0 %v550
      %v552 = vpop.f32.mrf.mxu0
      %v553 = vadd.f32 %v520, %v552
      %554 = vdwg.mxu0
      %555 = vmatpush.msra.mxu0 0.0
      %556 = vmatpush.msra.mxu0 0.0
      %557 = vmatpush.msra.mxu0 0.0
      %558 = vmatpush.msra.mxu0 0.0
      %559 = vmatpush.msra.mxu0 0.0
      %560 = vmatpush.msra.mxu0 0.0
      %561 = vmatpush.msra.mxu0 0.0
      %562 = vmatpush.msra.mxu0 0.0
      %563 = vmatpush.msra.mxu0 0.0
      %564 = vmatpush.msra.mxu0 0.0
      %565 = vmatpush.msra.mxu0 0.0
      %566 = vmatpush.msra.mxu0 0.0
      %v567 = vand.u32 %v204, 4294901760
      %568 = vmatpush.msra.mxu0 %v567
      %v569 = vand.u32 %v201, 4294901760
      %570 = vmatpush.msra.mxu0 %v569
      %v571 = vand.u32 %v198, 4294901760
      %572 = vmatpush.msra.mxu0 %v571
      %v573 = vand.u32 %v195, 4294901760
      %574 = vmatpush.msra.mxu0 %v573
      %v575 = vand.u32 %v208, 4294901760
      %576 = vmatmul.f32.gmra.mxu0 %v575
      %v577 = vpop.f32.mrf.mxu0
      %v578 = vadd.f32 %v553, %v577
      %579 = vdwg.mxu0
      %580 = vmatpush.msra.mxu0 0.0
      %581 = vmatpush.msra.mxu0 0.0
      %582 = vmatpush.msra.mxu0 0.0
      %583 = vmatpush.msra.mxu0 0.0
      %584 = vmatpush.msra.mxu0 0.0
      %585 = vmatpush.msra.mxu0 0.0
      %586 = vmatpush.msra.mxu0 0.0
      %587 = vmatpush.msra.mxu0 0.0
      %588 = vmatpush.msra.mxu0 0.0
      %589 = vmatpush.msra.mxu0 0.0
      %590 = vmatpush.msra.mxu0 0.0
      %591 = vmatpush.msra.mxu0 0.0
      %v592 = vand.u32 %v205, 4294901760
      %593 = vmatpush.msra.mxu0 %v592
      %v594 = vand.u32 %v202, 4294901760
      %595 = vmatpush.msra.mxu0 %v594
      %v596 = vand.u32 %v199, 4294901760
      %597 = vmatpush.msra.mxu0 %v596
      %v598 = vand.u32 %v196, 4294901760
      %599 = vmatpush.msra.mxu0 %v598
      %v600 = vand.u32 %v208, 4294901760
      %v601 = vsub.f32 %v208, %v600
      %v602 = vand.u32 %v601, 4294901760
      %v603 = vsub.f32 %v601, %v602
      %v604 = vand.u32 %v603, 4294901760
      %605 = vmatmul.f32.gmra.mxu0 %v604
      %v606 = vpop.f32.mrf.mxu0
      %v607 = vadd.f32 0.0, %v606
      %608 = vdwg.mxu0
      %609 = vmatpush.msra.mxu0 0.0
      %610 = vmatpush.msra.mxu0 0.0
      %611 = vmatpush.msra.mxu0 0.0
      %612 = vmatpush.msra.mxu0 0.0
      %613 = vmatpush.msra.mxu0 0.0
      %614 = vmatpush.msra.mxu0 0.0
      %615 = vmatpush.msra.mxu0 0.0
      %616 = vmatpush.msra.mxu0 0.0
      %617 = vmatpush.msra.mxu0 0.0
      %618 = vmatpush.msra.mxu0 0.0
      %619 = vmatpush.msra.mxu0 0.0
      %620 = vmatpush.msra.mxu0 0.0
      %v621 = vand.u32 %v205, 4294901760
      %v622 = vsub.f32 %v205, %v621
      %v623 = vand.u32 %v622, 4294901760
      %v624 = vsub.f32 %v622, %v623
      %v625 = vand.u32 %v624, 4294901760
      %626 = vmatpush.msra.mxu0 %v625
      %v627 = vand.u32 %v202, 4294901760
      %v628 = vsub.f32 %v202, %v627
      %v629 = vand.u32 %v628, 4294901760
      %v630 = vsub.f32 %v628, %v629
      %v631 = vand.u32 %v630, 4294901760
      %632 = vmatpush.msra.mxu0 %v631
      %v633 = vand.u32 %v199, 4294901760
      %v634 = vsub.f32 %v199, %v633
      %v635 = vand.u32 %v634, 4294901760
      %v636 = vsub.f32 %v634, %v635
      %v637 = vand.u32 %v636, 4294901760
      %638 = vmatpush.msra.mxu0 %v637
      %v639 = vand.u32 %v196, 4294901760
      %v640 = vsub.f32 %v196, %v639
      %v641 = vand.u32 %v640, 4294901760
      %v642 = vsub.f32 %v640, %v641
      %v643 = vand.u32 %v642, 4294901760
      %644 = vmatpush.msra.mxu0 %v643
      %v645 = vand.u32 %v208, 4294901760
      %646 = vmatmul.f32.gmra.mxu0 %v645
      %v647 = vpop.f32.mrf.mxu0
      %v648 = vadd.f32 %v607, %v647
      %649 = vdwg.mxu0
      %650 = vmatpush.msra.mxu0 0.0
      %651 = vmatpush.msra.mxu0 0.0
      %652 = vmatpush.msra.mxu0 0.0
      %653 = vmatpush.msra.mxu0 0.0
      %654 = vmatpush.msra.mxu0 0.0
      %655 = vmatpush.msra.mxu0 0.0
      %656 = vmatpush.msra.mxu0 0.0
      %657 = vmatpush.msra.mxu0 0.0
      %658 = vmatpush.msra.mxu0 0.0
      %659 = vmatpush.msra.mxu0 0.0
      %660 = vmatpush.msra.mxu0 0.0
      %661 = vmatpush.msra.mxu0 0.0
      %v662 = vand.u32 %v205, 4294901760
      %v663 = vsub.f32 %v205, %v662
      %664 = vmatpush.msra.mxu0 %v663
      %v665 = vand.u32 %v202, 4294901760
      %v666 = vsub.f32 %v202, %v665
      %667 = vmatpush.msra.mxu0 %v666
      %v668 = vand.u32 %v199, 4294901760
      %v669 = vsub.f32 %v199, %v668
      %670 = vmatpush.msra.mxu0 %v669
      %v671 = vand.u32 %v196, 4294901760
      %v672 = vsub.f32 %v196, %v671
      %673 = vmatpush.msra.mxu0 %v672
      %v674 = vand.u32 %v208, 4294901760
      %v675 = vsub.f32 %v208, %v674
      %676 = vmatmul.f32.gmra.mxu0 %v675
      %v677 = vpop.f32.mrf.mxu0
      %v678 = vadd.f32 %v648, %v677
      %679 = vdwg.mxu0
      %680 = vmatpush.msra.mxu0 0.0
      %681 = vmatpush.msra.mxu0 0.0
      %682 = vmatpush.msra.mxu0 0.0
      %683 = vmatpush.msra.mxu0 0.0
      %684 = vmatpush.msra.mxu0 0.0
      %685 = vmatpush.msra.mxu0 0.0
      %686 = vmatpush.msra.mxu0 0.0
      %687 = vmatpush.msra.mxu0 0.0
      %688 = vmatpush.msra.mxu0 0.0
      %689 = vmatpush.msra.mxu0 0.0
      %690 = vmatpush.msra.mxu0 0.0
      %691 = vmatpush.msra.mxu0 0.0
      %v692 = vand.u32 %v205, 4294901760
      %693 = vmatpush.msra.mxu0 %v692
      %v694 = vand.u32 %v202, 4294901760
      %695 = vmatpush.msra.mxu0 %v694
      %v696 = vand.u32 %v199, 4294901760
      %697 = vmatpush.msra.mxu0 %v696
      %v698 = vand.u32 %v196, 4294901760
      %699 = vmatpush.msra.mxu0 %v698
      %v700 = vand.u32 %v208, 4294901760
      %v701 = vsub.f32 %v208, %v700
      %v702 = vand.u32 %v701, 4294901760
      %703 = vmatmul.f32.gmra.mxu0 %v702
      %v704 = vpop.f32.mrf.mxu0
      %v705 = vadd.f32 %v678, %v704
      %706 = vdwg.mxu0
      %707 = vmatpush.msra.mxu0 0.0
      %708 = vmatpush.msra.mxu0 0.0
      %709 = vmatpush.msra.mxu0 0.0
      %710 = vmatpush.msra.mxu0 0.0
      %711 = vmatpush.msra.mxu0 0.0
      %712 = vmatpush.msra.mxu0 0.0
      %713 = vmatpush.msra.mxu0 0.0
      %714 = vmatpush.msra.mxu0 0.0
      %715 = vmatpush.msra.mxu0 0.0
      %716 = vmatpush.msra.mxu0 0.0
      %717 = vmatpush.msra.mxu0 0.0
      %718 = vmatpush.msra.mxu0 0.0
      %v719 = vand.u32 %v205, 4294901760
      %v720 = vsub.f32 %v205, %v719
      %v721 = vand.u32 %v720, 4294901760
      %722 = vmatpush.msra.mxu0 %v721
      %v723 = vand.u32 %v202, 4294901760
      %v724 = vsub.f32 %v202, %v723
      %v725 = vand.u32 %v724, 4294901760
      %726 = vmatpush.msra.mxu0 %v725
      %v727 = vand.u32 %v199, 4294901760
      %v728 = vsub.f32 %v199, %v727
      %v729 = vand.u32 %v728, 4294901760
      %730 = vmatpush.msra.mxu0 %v729
      %v731 = vand.u32 %v196, 4294901760
      %v732 = vsub.f32 %v196, %v731
      %v733 = vand.u32 %v732, 4294901760
      %734 = vmatpush.msra.mxu0 %v733
      %v735 = vand.u32 %v208, 4294901760
      %736 = vmatmul.f32.gmra.mxu0 %v735
      %v737 = vpop.f32.mrf.mxu0
      %v738 = vadd.f32 %v705, %v737
      %739 = vdwg.mxu0
      %740 = vmatpush.msra.mxu0 0.0
      %741 = vmatpush.msra.mxu0 0.0
      %742 = vmatpush.msra.mxu0 0.0
      %743 = vmatpush.msra.mxu0 0.0
      %744 = vmatpush.msra.mxu0 0.0
      %745 = vmatpush.msra.mxu0 0.0
      %746 = vmatpush.msra.mxu0 0.0
      %747 = vmatpush.msra.mxu0 0.0
      %748 = vmatpush.msra.mxu0 0.0
      %749 = vmatpush.msra.mxu0 0.0
      %750 = vmatpush.msra.mxu0 0.0
      %751 = vmatpush.msra.mxu0 0.0
      %v752 = vand.u32 %v205, 4294901760
      %753 = vmatpush.msra.mxu0 %v752
      %v754 = vand.u32 %v202, 4294901760
      %755 = vmatpush.msra.mxu0 %v754
      %v756 = vand.u32 %v199, 4294901760
      %757 = vmatpush.msra.mxu0 %v756
      %v758 = vand.u32 %v196, 4294901760
      %759 = vmatpush.msra.mxu0 %v758
      %v760 = vand.u32 %v208, 4294901760
      %761 = vmatmul.f32.gmra.mxu0 %v760
      %v762 = vpop.f32.mrf.mxu0
      %v763 = vadd.f32 %v738, %v762
      %764 = vdwg.mxu0
      %765 = vrot.lane.b32.xlu0 %v193, 32
      %v766 = vpop.permute.xlu0 %765
      %768 = vrot.lane.b32.xlu0 %v193, 64
      %v769 = vpop.permute.xlu0 %768
      %771 = vrot.lane.b32.xlu0 %v193, 96
      %v772 = vpop.permute.xlu0 %771
      %v774 = vsel %vm206, %v193, %v766
      %vm775 = vcmask 523264
      %v776 = vsel %vm775, %v774, %v769
      %vm777 = vcmask 785408
      %v778 = vsel %vm777, %v776, %v772
      %v779 = vmul.f32 %v393, %v778
      %v780 = vmul.f32 %v578, %v778
      %v781 = vld [vmem:[%s2] sm:$0xff]
      %v782 = vld [vmem:[%s2 + $0x8] sm:$0xff]
      %v783 = vld [vmem:[%s2 + $0x10] sm:$0xff]
      %v784 = vld [vmem:[%s2 + $0x18] sm:$0xff]
      %v785 = vld [vmem:[%s2 + $0x20] sm:$0xff]
      %v786 = vld [vmem:[%s2 + $0x28] sm:$0xff]
      %v787 = vld [vmem:[%s2 + $0x30] sm:$0xff]
      %v788 = vld [vmem:[%s2 + $0x38] sm:$0xff]
      %v789 = vld [vmem:[%s2 + $0x40] sm:$0xff]
      %v790 = vld [vmem:[%s2 + $0x48] sm:$0xff]
      %v791 = vld [vmem:[%s2 + $0x50] sm:$0xff]
      %v792 = vld [vmem:[%s2 + $0x58] sm:$0xff]
      %v793 = vld [vmem:[%s2 + $0x60] sm:$0xff]
      %v794 = vld [vmem:[%s2 + $0x68] sm:$0xff]
      %v795 = vld [vmem:[%s2 + $0x70] sm:$0xff]
      %v796 = vld [vmem:[%s2 + $0x78] sm:$0xff]
      %v797 = vld [vmem:[%s2 + $0x80] sm:$0xff]
      %v798 = vld [vmem:[%s2 + $0x88] sm:$0xff]
      %v799 = vld [vmem:[%s2 + $0x90] sm:$0xff]
      %v800 = vld [vmem:[%s2 + $0x98] sm:$0xff]
      %v801 = vld [vmem:[%s2 + $0xa0] sm:$0xff]
      %v802 = vld [vmem:[%s2 + $0xa8] sm:$0xff]
      %v803 = vld [vmem:[%s2 + $0xb0] sm:$0xff]
      %v804 = vld [vmem:[%s2 + $0xb8] sm:$0xff]
      %v805 = vld [vmem:[%s2 + $0xc0] sm:$0xff]
      %v806 = vld [vmem:[%s2 + $0xc8] sm:$0xff]
      %v807 = vld [vmem:[%s2 + $0xd0] sm:$0xff]
      %v808 = vld [vmem:[%s2 + $0xd8] sm:$0xff]
      %v809 = vld [vmem:[%s2 + $0xe0] sm:$0xff]
      %v810 = vld [vmem:[%s2 + $0xe8] sm:$0xff]
      %v811 = vld [vmem:[%s2 + $0xf0] sm:$0xff]
      %v812 = vld [vmem:[%s2 + $0xf8] sm:$0xff]
      %813 = vmatpush.msra.mxu0 %v796
      %814 = vmatpush.msra.mxu0 %v795
      %815 = vmatpush.msra.mxu0 %v794
      %816 = vmatpush.msra.mxu0 %v793
      %817 = vmatpush.msra.mxu0 %v792
      %818 = vmatpush.msra.mxu0 %v791
      %819 = vmatpush.msra.mxu0 %v790
      %820 = vmatpush.msra.mxu0 %v789
      %821 = vmatpush.msra.mxu0 %v788
      %822 = vmatpush.msra.mxu0 %v787
      %823 = vmatpush.msra.mxu0 %v786
      %824 = vmatpush.msra.mxu0 %v785
      %825 = vmatpush.msra.mxu0 %v784
      %826 = vmatpush.msra.mxu0 %v783
      %827 = vmatpush.msra.mxu0 %v782
      %828 = vmatpush.msra.mxu0 %v781
      %829 = vmatmul.f32.gmra.mxu0 %v779
      %v830 = vpop.f32.mrf.mxu0
      %v831 = vadd.f32 %v763, %v830
      %832 = vdwg.mxu0
      %833 = vmatpush.msra.mxu0 %v812
      %834 = vmatpush.msra.mxu0 %v811
      %835 = vmatpush.msra.mxu0 %v810
      %836 = vmatpush.msra.mxu0 %v809
      %837 = vmatpush.msra.mxu0 %v808
      %838 = vmatpush.msra.mxu0 %v807
      %839 = vmatpush.msra.mxu0 %v806
      %840 = vmatpush.msra.mxu0 %v805
      %841 = vmatpush.msra.mxu0 %v804
      %842 = vmatpush.msra.mxu0 %v803
      %843 = vmatpush.msra.mxu0 %v802
      %844 = vmatpush.msra.mxu0 %v801
      %845 = vmatpush.msra.mxu0 %v800
      %846 = vmatpush.msra.mxu0 %v799
      %847 = vmatpush.msra.mxu0 %v798
      %848 = vmatpush.msra.mxu0 %v797
      %849 = vmatmul.f32.gmra.mxu0 %v780
      %v850 = vpop.f32.mrf.mxu0
      %v851 = vadd.f32 %v831, %v850
      %852 = vdwg.mxu0
      %v853 = vld [vmem:[%s3] sm:$0x1]
      %v855 = vperm.slane %v853, 0
      %v857 = vadd.f32 %v851, %v855
      %vm858 = vcmask 64512
      %859 = vst.msk [vmem:[%s192] sm:$0xff] %vm858, %v857
      %p860 = scmp.lt.s32.totalorder %s15, 1
      %s861 = scalar_select %p860, %s15, 1
      %s862 = smul.addr %s861, 8
      %s863 = scalar_lea.vmem %s4, %s862
      // Predicated region
      $region37: #{tpu_custom_call.1} parent=35 // pred_check
        %p864 = pneg %p122
      $region38: #{tpu_custom_call.1} parent=35 // pred_check_branch
        %866 = sbr.rel (%p864) target = $region40
      $region39: #{tpu_custom_call.1} parent=35 // pred_region
        _
      $region40: #{tpu_custom_call.1} parent=35 // pred_fallthru
        _
    $region36: #{tpu_custom_call.1} parent=5 // pred_fallthru
      _
    %p867 = scmp.le.s32.totalorder 2, %s10
    // Predicated region
    $region41: #{tpu_custom_call.1} parent=5 // pred_check
      %p868 = pneg %p867
    $region42: #{tpu_custom_call.1} parent=5 // pred_check_branch
      %870 = sbr.rel (%p868) target = $region44
    $region43: #{tpu_custom_call.1} parent=5 // pred_region
      %s871 = ssub.s32 %s10, 2
      // Predicated region
      $region45: #{tpu_custom_call.1} parent=43 // pred_check
        %p872 = pneg %p128
      $region46: #{tpu_custom_call.1} parent=43 // pred_check_branch
        %874 = sbr.rel (%p872) target = $region48
      $region47: #{tpu_custom_call.1} parent=43 // pred_region
        %p875 = scmp.lt.s32.totalorder %s16, 1
        %s876 = scalar_select %p875, %s16, 1
        %s877 = smul.addr %s876, 8
        %s878 = scalar_lea.vmem %s4, %s877
      $region48: #{tpu_custom_call.1} parent=43 // pred_fallthru
        _
    $region44: #{tpu_custom_call.1} parent=5 // pred_fallthru
      _
  $region6: #{tpu_custom_call.1} parent=0 // loop_footer
    %s14 = sadd.s32 1, %s10
  $region7: #{tpu_custom_call.1} parent=0 // loop_footer_branch
    %9 = sbr.rel target = $region3
  $region8: #{tpu_custom_call.1} parent=0 // loop_exit
    _

</llo_original>
